<compile_context>
chip_gen: v7x
topology: tpu7x:2x2x1
jax: 0.10.0
libtpu: 0.0.40
codegen_flags: <defaults>
</compile_context>

<pallas_src>
import jax
import jax.numpy as jnp
from jax.experimental import pallas as pl
from jax.experimental.pallas import tpu as pltpu


def _round_up(x: int, m: int) -> int:
    return ((x + m - 1) // m) * m


def _fused_parallel_concat_kernel(x_ref, w_ref, b_ref, o_ref):
    # x_ref: (TB, H)   f32 batch tile (cast to bf16 in-kernel)
    # w_ref: (H, ND)   bf16 fused weight (concat of all branches along lanes)
    # b_ref: (1, ND)   f32 fused bias
    # o_ref: (TB, ND)  this batch tile's slice of the output
    x_bf16 = x_ref[...].astype(jnp.bfloat16)            # free-ish VPU pack
    acc = jnp.dot(x_bf16, w_ref[...], preferred_element_type=jnp.float32)
    acc = acc + b_ref[...]                               # f32 bias, row-broadcast
    o_ref[...] = acc.astype(o_ref.dtype)


def prepare_parallel_concat_params(weights, biases):
    """One-time (module-init) repack of the N parallel Linear branches.

    weights: (N, H, D)  (already transposed vs torch's (D, H) Linear weight)
    biases:  (N, D)
    returns: w_fused (H, N*D) bf16, b_fused (1, N*D) f32 such that
             w_fused[:, i*D:(i+1)*D] == weights[i]
    """
    N, H, D = weights.shape
    assert biases.shape == (N, D)
    w_fused = jnp.transpose(weights, (1, 0, 2)).reshape(H, N * D).astype(jnp.bfloat16)
    b_fused = biases.reshape(1, N * D).astype(jnp.float32)
    return w_fused, b_fused


def _choose_batch_tile(B, H, ND, out_itemsize, block_b):
    if B <= 16:
        # Single full-dim block: no (8,128) constraint, no padding, no masking.
        return B
    if B <= block_b:
        # Split into >= 2 tiles so both v7x TensorCores get work.
        tb = _round_up(pl.cdiv(B, 2), 16)
    else:
        tb = _round_up(block_b, 16)

    # Shrink tb until 2*x_tile + resident W/bias + 2*out_tile fits comfortably
    # under v7x's 64 MiB VMEM (budget ~40 MiB leaves compiler headroom).
    budget = 40 * 1024 * 1024

    def vmem_est(t):
        return (2 * t * H * 4) + (2 * H * ND * 2) + (2 * ND * 4) + (2 * t * ND * out_itemsize)

    while tb > 16 and vmem_est(tb) > budget:
        tb = max(16, _round_up(tb // 2, 16))
    return tb


def parallel_concat_fused(x, w_fused, b_fused, *, block_b: int = 256, out_dtype=None):
    """Forward pass: out[:, i*D:(i+1)*D] = x @ W_i + b_i, fused into one matmul.

    x:        (B, H) f32
    w_fused:  (H, N*D) bf16   (from prepare_parallel_concat_params)
    b_fused:  (1, N*D) f32
    returns:  (B, N*D) in out_dtype (default: x.dtype)
    """
    B, H = x.shape
    H_w, ND = w_fused.shape
    assert H_w == H and b_fused.shape == (1, ND)
    out_dtype = x.dtype if out_dtype is None else jnp.dtype(out_dtype)
    out_itemsize = jnp.dtype(out_dtype).itemsize

    tb = _choose_batch_tile(B, H, ND, out_itemsize, block_b)
    grid_b = pl.cdiv(B, tb)

    def run(single_buffer_resident: bool):
        if single_buffer_resident:
            # Grid-invariant operands: one VMEM buffer is enough (v7x VMEM win).
            w_spec = pl.BlockSpec((H, ND), lambda i: (0, 0), pipeline_mode=pl.Buffered(1))
            b_spec = pl.BlockSpec((1, ND), lambda i: (0, 0), pipeline_mode=pl.Buffered(1))
            w_copies = 1
        else:
            w_spec = pl.BlockSpec((H, ND), lambda i: (0, 0))
            b_spec = pl.BlockSpec((1, ND), lambda i: (0, 0))
            w_copies = 2

        vmem_est = (2 * tb * H * 4
                    + w_copies * (H * ND * 2 + ND * 4)
                    + 2 * tb * ND * out_itemsize)
        vmem_limit = int(min(max(32 * 1024 * 1024, 2 * vmem_est + (4 << 20)),
                             64 * 1024 * 1024))

        return pl.pallas_call(
            _fused_parallel_concat_kernel,
            out_shape=jax.ShapeDtypeStruct((B, ND), out_dtype),
            grid_spec=pltpu.PrefetchScalarGridSpec(
                num_scalar_prefetch=0,
                grid=(grid_b,),                               # batch-tile grid
                in_specs=[
                    pl.BlockSpec((tb, H), lambda i: (i, 0)),  # x batch tile (f32)
                    w_spec,                                   # fused W (resident)
                    b_spec,                                   # fused bias (resident)
                ],
                # One lane-dense (tb, N*D) output block per batch tile — the
                # concat is realized by the fused weight layout; no cat op.
                out_specs=pl.BlockSpec((tb, ND), lambda i: (i, 0)),
            ),
            compiler_params=pltpu.CompilerParams(
                dimension_semantics=("parallel",),            # megacore over batch tiles
                vmem_limit_bytes=vmem_limit,
            ),
        )(x, w_fused, b_fused)

    try:
        return run(True)
    except Exception:
        # pipeline_mode=pl.Buffered(1) not supported by this jax/Mosaic build;
        # fall back to default double-buffering (correctness unchanged).
        return run(False)


# ----------------------------------------------------------------------------
# References (module semantics)
# ----------------------------------------------------------------------------
def parallel_concat_ref_f32(x, weights, biases):
    outs = [x @ weights[i] + biases[i] for i in range(weights.shape[0])]
    return jnp.concatenate(outs, axis=1)


def parallel_concat_ref_bf16(x, weights, biases):
    # Same bf16 operand rounding as the kernel, f32 accumulation.
    xb = x.astype(jnp.bfloat16).astype(jnp.float32)
    wb = weights.astype(jnp.bfloat16).astype(jnp.float32)
    outs = [xb @ wb[i] + biases[i] for i in range(weights.shape[0])]
    return jnp.concatenate(outs, axis=1)


if __name__ == "__main__":
    key = jax.random.PRNGKey(0)
    kx, kw, kb = jax.random.split(key, 3)

    B = 4          # batch
    H = 32         # hidden / input features
    D = 128        # output features per parallel branch (lane-aligned)
    N = 3          # number of parallel modules

    x = jax.random.normal(kx, (B, H), dtype=jnp.float32)
    weights = jax.random.normal(kw, (N, H, D), dtype=jnp.float32) * 0.05
    biases = jax.random.normal(kb, (N, D), dtype=jnp.float32) * 0.1

    # Module-init-time repack: hoisted out of the forward path (perf review #1).
    w_fused, b_fused = prepare_parallel_concat_params(weights, biases)
    w_fused = jax.block_until_ready(w_fused)
    b_fused = jax.block_until_ready(b_fused)

    out = parallel_concat_fused(x, w_fused, b_fused)
    out = jax.block_until_ready(out)
    assert out.shape == (B, N * D), out.shape

    # Exact-ish check against a reference with matching bf16 operand rounding.
    ref_bf16 = parallel_concat_ref_bf16(x, weights, biases)
    assert jnp.allclose(out, ref_bf16, atol=2e-3, rtol=2e-3), (
        float(jnp.max(jnp.abs(out - ref_bf16)))
    )

    # Loose check against the full-f32 module semantics.
    ref_f32 = parallel_concat_ref_f32(x, weights, biases)
    assert jnp.allclose(out, ref_f32, atol=5e-2, rtol=5e-2), (
        float(jnp.max(jnp.abs(out - ref_f32)))
    )

    print("KERNEL_OK")
</pallas_src>

<mosaic_0001>
module attributes {stable_mosaic.version = 11 : i64} {
  func.func @_fused_parallel_concat_kernel(%arg0: i32, %arg1: memref<4x32xf32, #tpu.memory_space<vmem>>, %arg2: memref<32x384xbf16, #tpu.memory_space<vmem>>, %arg3: memref<1x384xf32, #tpu.memory_space<vmem>>, %arg4: memref<4x384xf32, #tpu.memory_space<vmem>>) attributes {dimension_semantics = [#tpu.dimension_semantics<parallel>], iteration_bounds = array<i64: 1>, scalar_prefetch = 0 : i64, scratch_operands = 0 : i64, tpu.core_type = #tpu.core_type<tc>, window_params = [{transform_indices = @transform_0, window_bounds = array<i64: 4, 32>}, {pipeline_mode = #tpu.pipeline_mode<synchronous>, transform_indices = @transform_1, window_bounds = array<i64: 32, 384>}, {pipeline_mode = #tpu.pipeline_mode<synchronous>, transform_indices = @transform_2, window_bounds = array<i64: 1, 384>}, {transform_indices = @transform_3, window_bounds = array<i64: 4, 384>}]} {
    %c0 = arith.constant 0 : index
    %c0_0 = arith.constant 0 : index
    %0 = vector.load %arg1[%c0, %c0_0] : memref<4x32xf32, #tpu.memory_space<vmem>>, vector<4x32xf32>
    %1 = arith.truncf %0 : vector<4x32xf32> to vector<4x32xbf16>
    %c0_1 = arith.constant 0 : index
    %c0_2 = arith.constant 0 : index
    %2 = vector.load %arg2[%c0_1, %c0_2] : memref<32x384xbf16, #tpu.memory_space<vmem>>, vector<32x384xbf16>
    %cst = arith.constant dense<0.000000e+00> : vector<4x384xf32>
    %3 = tpu.matmul %1, %2, %cst {dimension_numbers = #tpu.dot_dimension_numbers<[1], [0], [0], [1], [0, 0, 1, 1], [], []>} : vector<4x32xbf16>, vector<32x384xbf16>, vector<4x384xf32> -> vector<4x384xf32>
    %c0_3 = arith.constant 0 : index
    %c0_4 = arith.constant 0 : index
    %4 = vector.load %arg3[%c0_3, %c0_4] : memref<1x384xf32, #tpu.memory_space<vmem>>, vector<1x384xf32>
    %5 = vector.broadcast %4 : vector<1x384xf32> to vector<4x384xf32>
    %6 = arith.addf %3, %5 : vector<4x384xf32>
    %c0_5 = arith.constant 0 : index
    %c0_6 = arith.constant 0 : index
    %7 = vector.load %arg4[%c0_5, %c0_6] : memref<4x384xf32, #tpu.memory_space<vmem>>, vector<4x384xf32>
    tpu.vector_store %arg4[%c0_5, %c0_6], %6 {strides = array<i32>} : memref<4x384xf32, #tpu.memory_space<vmem>>, vector<4x384xf32>,
    return
  }
  func.func @transform_0(%arg0: i32) -> (i32, i32) {
    %c0_i32 = arith.constant 0 : i32
    %c0_i32_0 = arith.constant 0 : i32
    return %arg0, %c0_i32 : i32, i32
  }
  func.func @transform_1(%arg0: i32) -> (i32, i32) {
    %c0_i32 = arith.constant 0 : i32
    %c0_i32_0 = arith.constant 0 : i32
    %c0_i32_1 = arith.constant 0 : i32
    return %c0_i32, %c0_i32_0 : i32, i32
  }
  func.func @transform_2(%arg0: i32) -> (i32, i32) {
    %c0_i32 = arith.constant 0 : i32
    %c0_i32_0 = arith.constant 0 : i32
    %c0_i32_1 = arith.constant 0 : i32
    return %c0_i32, %c0_i32_0 : i32, i32
  }
  func.func @transform_3(%arg0: i32) -> (i32, i32) {
    %c0_i32 = arith.constant 0 : i32
    %c0_i32_0 = arith.constant 0 : i32
    return %arg0, %c0_i32 : i32, i32
  }
}

module attributes {stable_mosaic.version = 11 : i64} {
  func.func @_fused_parallel_concat_kernel(%arg0: i32, %arg1: memref<4x32xf32, #tpu.memory_space<vmem>>, %arg2: memref<32x384xbf16, #tpu.memory_space<vmem>>, %arg3: memref<1x384xf32, #tpu.memory_space<vmem>>, %arg4: memref<4x384xf32, #tpu.memory_space<vmem>>) attributes {dimension_semantics = [#tpu.dimension_semantics<parallel>], iteration_bounds = array<i64: 1>, scalar_prefetch = 0 : i64, scratch_operands = 0 : i64, tpu.core_type = #tpu.core_type<tc>, window_params = [{transform_indices = @transform_0, window_bounds = array<i64: 4, 32>}, {pipeline_mode = #tpu.pipeline_mode<synchronous>, transform_indices = @transform_1, window_bounds = array<i64: 32, 384>}, {pipeline_mode = #tpu.pipeline_mode<synchronous>, transform_indices = @transform_2, window_bounds = array<i64: 1, 384>}, {transform_indices = @transform_3, window_bounds = array<i64: 4, 384>}]} {
    %c0 = arith.constant 0 : index
    %c0_0 = arith.constant 0 : index
    %0 = vector.load %arg1[%c0, %c0_0] : memref<4x32xf32, #tpu.memory_space<vmem>>, vector<4x32xf32>
    %1 = arith.truncf %0 : vector<4x32xf32> to vector<4x32xbf16>
    %c0_1 = arith.constant 0 : index
    %c0_2 = arith.constant 0 : index
    %2 = vector.load %arg2[%c0_1, %c0_2] : memref<32x384xbf16, #tpu.memory_space<vmem>>, vector<32x384xbf16>
    %cst = arith.constant dense<0.000000e+00> : vector<4x384xf32>
    %3 = tpu.matmul %1, %2, %cst {dimension_numbers = #tpu.dot_dimension_numbers<[1], [0], [0], [1], [0, 0, 1, 1], [], []>} : vector<4x32xbf16>, vector<32x384xbf16>, vector<4x384xf32> -> vector<4x384xf32>
    %c0_3 = arith.constant 0 : index
    %c0_4 = arith.constant 0 : index
    %4 = vector.load %arg3[%c0_3, %c0_4] : memref<1x384xf32, #tpu.memory_space<vmem>>, vector<1x384xf32>
    %5 = vector.broadcast %4 : vector<1x384xf32> to vector<4x384xf32>
    %6 = arith.addf %3, %5 : vector<4x384xf32>
    %c0_5 = arith.constant 0 : index
    %c0_6 = arith.constant 0 : index
    %7 = vector.load %arg4[%c0_5, %c0_6] : memref<4x384xf32, #tpu.memory_space<vmem>>, vector<4x384xf32>
    tpu.vector_store %arg4[%c0_5, %c0_6], %6 {strides = array<i32>} : memref<4x384xf32, #tpu.memory_space<vmem>>, vector<4x384xf32>,
    return
  }
  func.func @transform_0(%arg0: i32) -> (i32, i32) {
    %c0_i32 = arith.constant 0 : i32
    %c0_i32_0 = arith.constant 0 : i32
    return %arg0, %c0_i32 : i32, i32
  }
  func.func @transform_1(%arg0: i32) -> (i32, i32) {
    %c0_i32 = arith.constant 0 : i32
    %c0_i32_0 = arith.constant 0 : i32
    %c0_i32_1 = arith.constant 0 : i32
    return %c0_i32, %c0_i32_0 : i32, i32
  }
  func.func @transform_2(%arg0: i32) -> (i32, i32) {
    %c0_i32 = arith.constant 0 : i32
    %c0_i32_0 = arith.constant 0 : i32
    %c0_i32_1 = arith.constant 0 : i32
    return %c0_i32, %c0_i32_0 : i32, i32
  }
  func.func @transform_3(%arg0: i32) -> (i32, i32) {
    %c0_i32 = arith.constant 0 : i32
    %c0_i32_0 = arith.constant 0 : i32
    return %arg0, %c0_i32 : i32, i32
  }
}

</mosaic_0001>

<llo_original>
// kernel: tpu_custom_call.1
$region0: #{tpu_custom_call.1}
  #allocation0 [shape = 'u32[]', space=smem, size = 0x4, offset = 0x4, fixed_abs, tag = 'smem constant byte address 0x4 - core index']
  #allocation1 [shape = 'u32[144,128]{1,0:T(1,128)}', space=vmem, size = 0x12000, scoped, tag = 'internal scratch']
  %s0 = inlined_call_operand.hbm [shape: f32[4,32], index: 0, kind: input, shape index: {}]
  %s1 = inlined_call_operand.hbm [shape: bf16[32,384], index: 1, kind: input, shape index: {}]
  %s2 = inlined_call_operand.vmem [shape: f32[1,384], index: 2, kind: input, shape index: {}]
  %s3 = inlined_call_operand.hbm [shape: f32[4,384], index: 3, kind: output, shape index: {}]
  %s4 = sld [smem:[#allocation0]]
  $region30: #{tpu_custom_call.1} parent=0
    _
  %s6 = ssub.s32 1, %s4
  %s7 = scalar_select 0, %s6, %s4
  $region1: #{tpu_custom_call.1} parent=0
    #allocation2 [shape = 'u8[2048]{0}', space=vmem, size = 0x800, scoped, tag = 'input window, operand 0, single buffered']
    #allocation3 [shape = 's32[1]{0}', space=sflag, size = 0x4, scoped, tag = 'scoped memory for tpu_custom_call.1']
    #allocation4 [shape = 's32[1]{0}', space=sflag, size = 0x4, scoped, tag = 'scoped memory for tpu_custom_call.1']
    #allocation5 [shape = 'u8[24576]{0}', space=vmem, size = 0x6000, scoped, tag = 'input window, operand 1, single buffered']
    #allocation6 [shape = 's32[1]{0}', space=sflag, size = 0x4, scoped, tag = 'scoped memory for tpu_custom_call.1']
    #allocation7 [shape = 'u8[6144]{0}', space=vmem, size = 0x1800, scoped, tag = 'output window, operand 0, single buffered']
    %8 = vsyncpa [#allocation3], 0
    %9 = vsyncpa [#allocation6], 0
    %10 = vsyncpa [#allocation4], 0
    // Predicated region
    $region2: #{tpu_custom_call.1} parent=1 // pred_check
      _
    $region3: #{tpu_custom_call.1} parent=1 // pred_check_branch
      %12 = sbr.rel (0) target = $region5
    $region4: #{tpu_custom_call.1} parent=1 // pred_region
      %s14 = ssub.s32 64, 64
      %15 = vsyncadd [#allocation3], %s14
      %s17 = sshll.u32 [#allocation2], 4
      %s18 = int_to_ptr.vmem [resolvable:$true] %s17
      %20 = dma.hbm_to_vmem [thread:$0]  %s0, 64, %s18, [#allocation3]
    $region5: #{tpu_custom_call.1} parent=1 // pred_fallthru
      _
    // Predicated region
    $region6: #{tpu_custom_call.1} parent=1 // pred_check
      _
    $region7: #{tpu_custom_call.1} parent=1 // pred_check_branch
      %22 = sbr.rel (0) target = $region9
    $region8: #{tpu_custom_call.1} parent=1 // pred_region
      %s24 = ssub.s32 768, 768
      %25 = vsyncadd [#allocation6], %s24
      %s26 = sshll.u32 [#allocation5], 4
      %s27 = int_to_ptr.vmem [resolvable:$true] %s26
      %32 = dma.hbm_to_vmem [thread:$0]  %s1, 768, %s27, [#allocation6], 192, 192, 12
    $region9: #{tpu_custom_call.1} parent=1 // pred_fallthru
      _
    // Predicated region
    $region10: #{tpu_custom_call.1} parent=1 // pred_check
      _
    $region11: #{tpu_custom_call.1} parent=1 // pred_check_branch
      %34 = sbr.rel (0) target = $region13
    $region12: #{tpu_custom_call.1} parent=1 // pred_region
      _
    $region13: #{tpu_custom_call.1} parent=1 // pred_fallthru
      _
    // Predicated region
    $region14: #{tpu_custom_call.1} parent=1 // pred_check
      _
    $region15: #{tpu_custom_call.1} parent=1 // pred_check_branch
      %36 = sbr.rel (0) target = $region17
    $region16: #{tpu_custom_call.1} parent=1 // pred_region
      %37 = dma.done [#allocation3], 64
    $region17: #{tpu_custom_call.1} parent=1 // pred_fallthru
      _
    // Predicated region
    $region18: #{tpu_custom_call.1} parent=1 // pred_check
      _
    $region19: #{tpu_custom_call.1} parent=1 // pred_check_branch
      %39 = sbr.rel (0) target = $region21
    $region20: #{tpu_custom_call.1} parent=1 // pred_region
      %40 = dma.done [#allocation6], 768
    $region21: #{tpu_custom_call.1} parent=1 // pred_fallthru
      _
    %v42 = vld [vmem:[#allocation2] sm:$0xf]
    %v43 = vpack.c.bf16 %v42, %v42
    %v44 = vld [vmem:[#allocation5] sm:$0xff]
    %v45 = vld [vmem:[#allocation5 + $0x8] sm:$0xf]
    %v46 = vld [vmem:[#allocation5 + $0xc] sm:$0xff]
    %v47 = vld [vmem:[#allocation5 + $0x14] sm:$0xf]
    %v48 = vld [vmem:[#allocation5 + $0x18] sm:$0xff]
    %v49 = vld [vmem:[#allocation5 + $0x20] sm:$0xf]
    %v50 = vld [vmem:[#allocation5 + $0x24] sm:$0xff]
    %v51 = vld [vmem:[#allocation5 + $0x2c] sm:$0xf]
    %v52 = vld [vmem:[%s2] sm:$0x7]
    %v54 = vlaneseq
    %v55 = vshrl.u32 %v54, 7
    %v56 = vsub.s32 0, %v55
    %v57 = vrot.slane %v52, %v56
    %v58 = vlaneseq
    %v59 = vshrl.u32 %v58, 7
    %v60 = vsub.s32 1, %v59
    %v61 = vrot.slane %v52, %v60
    %v62 = vlaneseq
    %v63 = vshrl.u32 %v62, 7
    %v64 = vsub.s32 2, %v63
    %v65 = vrot.slane %v52, %v64
    %v77 = vunpack.c.l.b16 %v44
    %v78 = vunpack.c.h.b16 %v44
    %v79 = vunpack.c.l.b16 %v45
    %v80 = vunpack.c.l.b16 %v46
    %v81 = vunpack.c.h.b16 %v46
    %v82 = vunpack.c.l.b16 %v47
    %v83 = vunpack.c.l.b16 %v48
    %v84 = vunpack.c.h.b16 %v48
    %v85 = vunpack.c.l.b16 %v49
    %v86 = vunpack.c.l.b16 %v50
    %v87 = vunpack.c.h.b16 %v50
    %v88 = vunpack.c.l.b16 %v51
    %v89 = vpack.c.b16 %v80, %v77
    %v90 = vpack.c.b16 %v81, %v78
    %v91 = vpack.c.b16 %v82, %v79
    %v92 = vpack.c.b16 %v86, %v83
    %v93 = vpack.c.b16 %v87, %v84
    %v94 = vpack.c.b16 %v88, %v85
    %vm101 = vcmask 261120
    %v103 = vsel %vm101, %v43, 0
    %105 = vmatprep.subr.bf16.mxu0 %v90
    %106 = vmatpush1.bf16.msra.mxu0 %v89
    %107 = vmatprep.subr.bf16.mxu0 %v93
    %108 = vmatpush1.bf16.msra.mxu0 %v92
    %109 = vmatprep.subr.bf16.mxu0 0
    %110 = vmatpush1.bf16.msra.mxu0 0
    %111 = vmatprep.subr.bf16.mxu0 0
    %112 = vmatpush1.bf16.msra.mxu0 0
    %113 = vmatprep.subr.bf16.mxu0 0
    %114 = vmatpush1.bf16.msra.mxu0 0
    %115 = vmatprep.subr.bf16.mxu0 0
    %116 = vmatpush1.bf16.msra.mxu0 0
    %117 = vmatprep.subr.bf16.mxu0 0
    %118 = vmatpush1.bf16.msra.mxu0 0
    %119 = vmatprep.subr.bf16.mxu0 0
    %120 = vmatpush1.bf16.msra.mxu0 0
    %121 = vmatprep.subr.bf16.mxu0 0
    %122 = vmatpush1.bf16.msra.mxu0 0
    %123 = vmatprep.subr.bf16.mxu0 0
    %124 = vmatpush1.bf16.msra.mxu0 0
    %125 = vmatprep.subr.bf16.mxu0 0
    %126 = vmatpush1.bf16.msra.mxu0 0
    %127 = vmatprep.subr.bf16.mxu0 0
    %128 = vmatpush1.bf16.msra.mxu0 0
    %129 = vmatprep.subr.bf16.mxu0 0
    %130 = vmatpush1.bf16.msra.mxu0 0
    %131 = vmatprep.subr.bf16.mxu0 0
    %132 = vmatpush1.bf16.msra.mxu0 0
    %133 = vmatprep.subr.bf16.mxu0 0
    %134 = vmatpush1.bf16.msra.mxu0 0
    %135 = vmatprep.subr.bf16.mxu0 0
    %136 = vmatpush1.bf16.msra.mxu0 0
    %137 = vmatprep.mubr.bf16.mxu0 0
    %138 = vmatmul.mubr.bf16.gmra.mrb[0].mxu0 %v103
    %v139 = vpop.f32.mrb[0].mxu0
    %v140 = vadd.f32 %v57, %v139
    %v141 = vpop.f32.mrb[0].mxu0
    %v142 = vadd.f32 %v61, %v141
    %v143 = vpop.f32.mrb[0].mxu0
    %v144 = vpop.f32.mrb[0].mxu0
    %145 = vdwg.mxu0
    %146 = vmatprep.subr.bf16.mxu0 0
    %147 = vmatpush1.bf16.msra.mxu0 %v91
    %148 = vmatprep.subr.bf16.mxu0 0
    %149 = vmatpush1.bf16.msra.mxu0 %v94
    %150 = vmatprep.subr.bf16.mxu0 0
    %151 = vmatpush1.bf16.msra.mxu0 0
    %152 = vmatprep.subr.bf16.mxu0 0
    %153 = vmatpush1.bf16.msra.mxu0 0
    %154 = vmatprep.subr.bf16.mxu0 0
    %155 = vmatpush1.bf16.msra.mxu0 0
    %156 = vmatprep.subr.bf16.mxu0 0
    %157 = vmatpush1.bf16.msra.mxu0 0
    %158 = vmatprep.subr.bf16.mxu0 0
    %159 = vmatpush1.bf16.msra.mxu0 0
    %160 = vmatprep.subr.bf16.mxu0 0
    %161 = vmatpush1.bf16.msra.mxu0 0
    %162 = vmatprep.subr.bf16.mxu0 0
    %163 = vmatpush1.bf16.msra.mxu0 0
    %164 = vmatprep.subr.bf16.mxu0 0
    %165 = vmatpush1.bf16.msra.mxu0 0
    %166 = vmatprep.subr.bf16.mxu0 0
    %167 = vmatpush1.bf16.msra.mxu0 0
    %168 = vmatprep.subr.bf16.mxu0 0
    %169 = vmatpush1.bf16.msra.mxu0 0
    %170 = vmatprep.subr.bf16.mxu0 0
    %171 = vmatpush1.bf16.msra.mxu0 0
    %172 = vmatprep.subr.bf16.mxu0 0
    %173 = vmatpush1.bf16.msra.mxu0 0
    %174 = vmatprep.subr.bf16.mxu0 0
    %175 = vmatpush1.bf16.msra.mxu0 0
    %176 = vmatprep.subr.bf16.mxu0 0
    %177 = vmatpush1.bf16.msra.mxu0 0
    %178 = vmatprep.mubr.bf16.mxu0 0
    %179 = vmatmul.mubr.bf16.gmra.mrb[0].mxu0 %v103
    %v180 = vpop.f32.mrb[0].mxu0
    %v181 = vadd.f32 %v65, %v180
    %v182 = vpop.f32.mrb[0].mxu0
    %v183 = vpop.f32.mrb[0].mxu0
    %v184 = vpop.f32.mrb[0].mxu0
    %185 = vdwg.mxu0
    %v188 = vcombine.low %v140, %v142
    %190 = vst [vmem:[#allocation7] sm:$0xff] %v188
    %191 = vst [vmem:[#allocation7 + $0x8] sm:$0xf] %v181
    // Predicated region
    $region22: #{tpu_custom_call.1} parent=1 // pred_check
      _
    $region23: #{tpu_custom_call.1} parent=1 // pred_check_branch
      %193 = sbr.rel (0) target = $region25
    $region24: #{tpu_custom_call.1} parent=1 // pred_region
      %s195 = ssub.s32 192, 192
      %196 = vsyncadd [#allocation4], %s195
      %s198 = sshll.u32 [#allocation7], 4
      %s199 = int_to_ptr.vmem [resolvable:$true] %s198
      %201 = dma.vmem_to_hbm [thread:$0]  %s199, 192, %s3, [#allocation4]
    $region25: #{tpu_custom_call.1} parent=1 // pred_fallthru
      _
    // Predicated region
    $region26: #{tpu_custom_call.1} parent=1 // pred_check
      _
    $region27: #{tpu_custom_call.1} parent=1 // pred_check_branch
      %203 = sbr.rel (0) target = $region29
    $region28: #{tpu_custom_call.1} parent=1 // pred_region
      %204 = dma.done [#allocation4], 192
    $region29: #{tpu_custom_call.1} parent=1 // pred_fallthru
      _
    %205 = vsyncpa [#allocation3], 1
    %206 = vsyncpa [#allocation6], 1
    %207 = vsyncpa [#allocation4], 1

// kernel: tpu_custom_call.1
$region0: #{tpu_custom_call.1}
  #allocation0 [shape = 'u32[]', space=smem, size = 0x4, offset = 0x4, fixed_abs, tag = 'smem constant byte address 0x4 - core index']
  #allocation1 [shape = 'u32[144,128]{1,0:T(1,128)}', space=vmem, size = 0x12000, scoped, tag = 'internal scratch']
  %s0 = inlined_call_operand.hbm [shape: f32[4,32], index: 0, kind: input, shape index: {}]
  %s1 = inlined_call_operand.hbm [shape: bf16[32,384], index: 1, kind: input, shape index: {}]
  %s2 = inlined_call_operand.vmem [shape: f32[1,384], index: 2, kind: input, shape index: {}]
  %s3 = inlined_call_operand.hbm [shape: f32[4,384], index: 3, kind: output, shape index: {}]
  %s4 = sld [smem:[#allocation0]]
  $region30: #{tpu_custom_call.1} parent=0
    _
  %s6 = ssub.s32 1, %s4
  %s7 = scalar_select 0, %s6, %s4
  $region1: #{tpu_custom_call.1} parent=0
    #allocation2 [shape = 'u8[2048]{0}', space=vmem, size = 0x800, scoped, tag = 'input window, operand 0, single buffered']
    #allocation3 [shape = 's32[1]{0}', space=sflag, size = 0x4, scoped, tag = 'scoped memory for tpu_custom_call.1']
    #allocation4 [shape = 's32[1]{0}', space=sflag, size = 0x4, scoped, tag = 'scoped memory for tpu_custom_call.1']
    #allocation5 [shape = 'u8[24576]{0}', space=vmem, size = 0x6000, scoped, tag = 'input window, operand 1, single buffered']
    #allocation6 [shape = 's32[1]{0}', space=sflag, size = 0x4, scoped, tag = 'scoped memory for tpu_custom_call.1']
    #allocation7 [shape = 'u8[6144]{0}', space=vmem, size = 0x1800, scoped, tag = 'output window, operand 0, single buffered']
    %8 = vsyncpa [#allocation3], 0
    %9 = vsyncpa [#allocation6], 0
    %10 = vsyncpa [#allocation4], 0
    // Predicated region
    $region2: #{tpu_custom_call.1} parent=1 // pred_check
      _
    $region3: #{tpu_custom_call.1} parent=1 // pred_check_branch
      %12 = sbr.rel (0) target = $region5
    $region4: #{tpu_custom_call.1} parent=1 // pred_region
      %s14 = ssub.s32 64, 64
      %15 = vsyncadd [#allocation3], %s14
      %s17 = sshll.u32 [#allocation2], 4
      %s18 = int_to_ptr.vmem [resolvable:$true] %s17
      %20 = dma.hbm_to_vmem [thread:$0]  %s0, 64, %s18, [#allocation3]
    $region5: #{tpu_custom_call.1} parent=1 // pred_fallthru
      _
    // Predicated region
    $region6: #{tpu_custom_call.1} parent=1 // pred_check
      _
    $region7: #{tpu_custom_call.1} parent=1 // pred_check_branch
      %22 = sbr.rel (0) target = $region9
    $region8: #{tpu_custom_call.1} parent=1 // pred_region
      %s24 = ssub.s32 768, 768
      %25 = vsyncadd [#allocation6], %s24
      %s26 = sshll.u32 [#allocation5], 4
      %s27 = int_to_ptr.vmem [resolvable:$true] %s26
      %32 = dma.hbm_to_vmem [thread:$0]  %s1, 768, %s27, [#allocation6], 192, 192, 12
    $region9: #{tpu_custom_call.1} parent=1 // pred_fallthru
      _
    // Predicated region
    $region10: #{tpu_custom_call.1} parent=1 // pred_check
      _
    $region11: #{tpu_custom_call.1} parent=1 // pred_check_branch
      %34 = sbr.rel (0) target = $region13
    $region12: #{tpu_custom_call.1} parent=1 // pred_region
      _
    $region13: #{tpu_custom_call.1} parent=1 // pred_fallthru
      _
    // Predicated region
    $region14: #{tpu_custom_call.1} parent=1 // pred_check
      _
    $region15: #{tpu_custom_call.1} parent=1 // pred_check_branch
      %36 = sbr.rel (0) target = $region17
    $region16: #{tpu_custom_call.1} parent=1 // pred_region
      %37 = dma.done [#allocation3], 64
    $region17: #{tpu_custom_call.1} parent=1 // pred_fallthru
      _
    // Predicated region
    $region18: #{tpu_custom_call.1} parent=1 // pred_check
      _
    $region19: #{tpu_custom_call.1} parent=1 // pred_check_branch
      %39 = sbr.rel (0) target = $region21
    $region20: #{tpu_custom_call.1} parent=1 // pred_region
      %40 = dma.done [#allocation6], 768
    $region21: #{tpu_custom_call.1} parent=1 // pred_fallthru
      _
    %v42 = vld [vmem:[#allocation2] sm:$0xf]
    %v43 = vpack.c.bf16 %v42, %v42
    %v44 = vld [vmem:[#allocation5] sm:$0xff]
    %v45 = vld [vmem:[#allocation5 + $0x8] sm:$0xf]
    %v46 = vld [vmem:[#allocation5 + $0xc] sm:$0xff]
    %v47 = vld [vmem:[#allocation5 + $0x14] sm:$0xf]
    %v48 = vld [vmem:[#allocation5 + $0x18] sm:$0xff]
    %v49 = vld [vmem:[#allocation5 + $0x20] sm:$0xf]
    %v50 = vld [vmem:[#allocation5 + $0x24] sm:$0xff]
    %v51 = vld [vmem:[#allocation5 + $0x2c] sm:$0xf]
    %v52 = vld [vmem:[%s2] sm:$0x7]
    %v54 = vlaneseq
    %v55 = vshrl.u32 %v54, 7
    %v56 = vsub.s32 0, %v55
    %v57 = vrot.slane %v52, %v56
    %v58 = vlaneseq
    %v59 = vshrl.u32 %v58, 7
    %v60 = vsub.s32 1, %v59
    %v61 = vrot.slane %v52, %v60
    %v62 = vlaneseq
    %v63 = vshrl.u32 %v62, 7
    %v64 = vsub.s32 2, %v63
    %v65 = vrot.slane %v52, %v64
    %v77 = vunpack.c.l.b16 %v44
    %v78 = vunpack.c.h.b16 %v44
    %v79 = vunpack.c.l.b16 %v45
    %v80 = vunpack.c.l.b16 %v46
    %v81 = vunpack.c.h.b16 %v46
    %v82 = vunpack.c.l.b16 %v47
    %v83 = vunpack.c.l.b16 %v48
    %v84 = vunpack.c.h.b16 %v48
    %v85 = vunpack.c.l.b16 %v49
    %v86 = vunpack.c.l.b16 %v50
    %v87 = vunpack.c.h.b16 %v50
    %v88 = vunpack.c.l.b16 %v51
    %v89 = vpack.c.b16 %v80, %v77
    %v90 = vpack.c.b16 %v81, %v78
    %v91 = vpack.c.b16 %v82, %v79
    %v92 = vpack.c.b16 %v86, %v83
    %v93 = vpack.c.b16 %v87, %v84
    %v94 = vpack.c.b16 %v88, %v85
    %vm101 = vcmask 261120
    %v103 = vsel %vm101, %v43, 0
    %105 = vmatprep.subr.bf16.mxu0 %v90
    %106 = vmatpush1.bf16.msra.mxu0 %v89
    %107 = vmatprep.subr.bf16.mxu0 %v93
    %108 = vmatpush1.bf16.msra.mxu0 %v92
    %109 = vmatprep.subr.bf16.mxu0 0
    %110 = vmatpush1.bf16.msra.mxu0 0
    %111 = vmatprep.subr.bf16.mxu0 0
    %112 = vmatpush1.bf16.msra.mxu0 0
    %113 = vmatprep.subr.bf16.mxu0 0
    %114 = vmatpush1.bf16.msra.mxu0 0
    %115 = vmatprep.subr.bf16.mxu0 0
    %116 = vmatpush1.bf16.msra.mxu0 0
    %117 = vmatprep.subr.bf16.mxu0 0
    %118 = vmatpush1.bf16.msra.mxu0 0
    %119 = vmatprep.subr.bf16.mxu0 0
    %120 = vmatpush1.bf16.msra.mxu0 0
    %121 = vmatprep.subr.bf16.mxu0 0
    %122 = vmatpush1.bf16.msra.mxu0 0
    %123 = vmatprep.subr.bf16.mxu0 0
    %124 = vmatpush1.bf16.msra.mxu0 0
    %125 = vmatprep.subr.bf16.mxu0 0
    %126 = vmatpush1.bf16.msra.mxu0 0
    %127 = vmatprep.subr.bf16.mxu0 0
    %128 = vmatpush1.bf16.msra.mxu0 0
    %129 = vmatprep.subr.bf16.mxu0 0
    %130 = vmatpush1.bf16.msra.mxu0 0
    %131 = vmatprep.subr.bf16.mxu0 0
    %132 = vmatpush1.bf16.msra.mxu0 0
    %133 = vmatprep.subr.bf16.mxu0 0
    %134 = vmatpush1.bf16.msra.mxu0 0
    %135 = vmatprep.subr.bf16.mxu0 0
    %136 = vmatpush1.bf16.msra.mxu0 0
    %137 = vmatprep.mubr.bf16.mxu0 0
    %138 = vmatmul.mubr.bf16.gmra.mrb[0].mxu0 %v103
    %v139 = vpop.f32.mrb[0].mxu0
    %v140 = vadd.f32 %v57, %v139
    %v141 = vpop.f32.mrb[0].mxu0
    %v142 = vadd.f32 %v61, %v141
    %v143 = vpop.f32.mrb[0].mxu0
    %v144 = vpop.f32.mrb[0].mxu0
    %145 = vdwg.mxu0
    %146 = vmatprep.subr.bf16.mxu0 0
    %147 = vmatpush1.bf16.msra.mxu0 %v91
    %148 = vmatprep.subr.bf16.mxu0 0
    %149 = vmatpush1.bf16.msra.mxu0 %v94
    %150 = vmatprep.subr.bf16.mxu0 0
    %151 = vmatpush1.bf16.msra.mxu0 0
    %152 = vmatprep.subr.bf16.mxu0 0
    %153 = vmatpush1.bf16.msra.mxu0 0
    %154 = vmatprep.subr.bf16.mxu0 0
    %155 = vmatpush1.bf16.msra.mxu0 0
    %156 = vmatprep.subr.bf16.mxu0 0
    %157 = vmatpush1.bf16.msra.mxu0 0
    %158 = vmatprep.subr.bf16.mxu0 0
    %159 = vmatpush1.bf16.msra.mxu0 0
    %160 = vmatprep.subr.bf16.mxu0 0
    %161 = vmatpush1.bf16.msra.mxu0 0
    %162 = vmatprep.subr.bf16.mxu0 0
    %163 = vmatpush1.bf16.msra.mxu0 0
    %164 = vmatprep.subr.bf16.mxu0 0
    %165 = vmatpush1.bf16.msra.mxu0 0
    %166 = vmatprep.subr.bf16.mxu0 0
    %167 = vmatpush1.bf16.msra.mxu0 0
    %168 = vmatprep.subr.bf16.mxu0 0
    %169 = vmatpush1.bf16.msra.mxu0 0
    %170 = vmatprep.subr.bf16.mxu0 0
    %171 = vmatpush1.bf16.msra.mxu0 0
    %172 = vmatprep.subr.bf16.mxu0 0
    %173 = vmatpush1.bf16.msra.mxu0 0
    %174 = vmatprep.subr.bf16.mxu0 0
    %175 = vmatpush1.bf16.msra.mxu0 0
    %176 = vmatprep.subr.bf16.mxu0 0
    %177 = vmatpush1.bf16.msra.mxu0 0
    %178 = vmatprep.mubr.bf16.mxu0 0
    %179 = vmatmul.mubr.bf16.gmra.mrb[0].mxu0 %v103
    %v180 = vpop.f32.mrb[0].mxu0
    %v181 = vadd.f32 %v65, %v180
    %v182 = vpop.f32.mrb[0].mxu0
    %v183 = vpop.f32.mrb[0].mxu0
    %v184 = vpop.f32.mrb[0].mxu0
    %185 = vdwg.mxu0
    %v188 = vcombine.low %v140, %v142
    %190 = vst [vmem:[#allocation7] sm:$0xff] %v188
    %191 = vst [vmem:[#allocation7 + $0x8] sm:$0xf] %v181
    // Predicated region
    $region22: #{tpu_custom_call.1} parent=1 // pred_check
      _
    $region23: #{tpu_custom_call.1} parent=1 // pred_check_branch
      %193 = sbr.rel (0) target = $region25
    $region24: #{tpu_custom_call.1} parent=1 // pred_region
      %s195 = ssub.s32 192, 192
      %196 = vsyncadd [#allocation4], %s195
      %s198 = sshll.u32 [#allocation7], 4
      %s199 = int_to_ptr.vmem [resolvable:$true] %s198
      %201 = dma.vmem_to_hbm [thread:$0]  %s199, 192, %s3, [#allocation4]
    $region25: #{tpu_custom_call.1} parent=1 // pred_fallthru
      _
    // Predicated region
    $region26: #{tpu_custom_call.1} parent=1 // pred_check
      _
    $region27: #{tpu_custom_call.1} parent=1 // pred_check_branch
      %203 = sbr.rel (0) target = $region29
    $region28: #{tpu_custom_call.1} parent=1 // pred_region
      %204 = dma.done [#allocation4], 192
    $region29: #{tpu_custom_call.1} parent=1 // pred_fallthru
      _
    %205 = vsyncpa [#allocation3], 1
    %206 = vsyncpa [#allocation6], 1
    %207 = vsyncpa [#allocation4], 1

</llo_original>
